<compile_context>
chip_gen: v6e
topology: v6e:2x2x1
jax: 0.10.0
libtpu: 0.0.40
codegen_flags: <defaults>
</compile_context>

<pallas_src>
import jax
import jax.numpy as jnp
from jax.experimental import pallas as pl
from jax.experimental.pallas import tpu as pltpu


def _ce_kernel(logits_ref, tgt_ref, cw_ref, loss_ref):
    """loss[i] = -class_weights[target[i]] * log_softmax(logits)[i, target[i]]."""
    logits = logits_ref[...]                                       # (TN, V) f32
    tn, v = logits.shape

    # Numerically stable log-sum-exp; single max pass, reused below.
    m = jnp.max(logits, axis=-1, keepdims=True)                    # (TN, 1)
    shifted = logits - m                                           # (TN, V)
    lse = jnp.log(jnp.sum(jnp.exp(shifted), axis=-1, keepdims=True))  # (TN, 1)

    # One-hot gather of the target logit and its class weight; avoids ever
    # materializing the full (TN, V) log-prob tensor.
    col_ids = jax.lax.broadcasted_iota(jnp.int32, (tn, v), 1)
    onehot = (col_ids == tgt_ref[...]).astype(jnp.float32)         # (TN, V)
    logit_t = jnp.sum(shifted * onehot, axis=-1, keepdims=True)    # shifted[i, t[i]]
    w_t = jnp.sum(cw_ref[...] * onehot, axis=-1, keepdims=True)    # cw[t[i]]

    # -log_softmax[i, t[i]] = lse - shifted[i, t[i]]
    loss_ref[...] = w_t * (lse - logit_t)


def cross_entropy_loss(logits, target, class_weights, *, tile_n=256):
    """logits: (N, V) f32, target: (N,) int, class_weights: (V,) f32 -> (N,) f32."""
    n, v = logits.shape

    # Clamp the token tile so one (tile, V) f32 logits tile stays under ~4 MiB:
    # with double buffering plus the live (tile, V) intermediates, total VMEM
    # stays comfortably inside the 32 MiB scoped budget on every generation.
    budget_bytes = 4 * 1024 * 1024
    cap = max(8, (budget_bytes // (4 * v)) // 8 * 8)
    tile = int(max(8, (min(tile_n, cap) // 8) * 8))

    # Pad the token axis to a multiple of the tile (padded rows are sliced off).
    n_pad = pl.cdiv(n, tile) * tile
    pad = n_pad - n
    logits_p = jnp.pad(logits.astype(jnp.float32), ((0, pad), (0, 0)))
    target_p = jnp.pad(target.astype(jnp.int32), ((0, pad),)).reshape(n_pad, 1)
    cw = class_weights.astype(jnp.float32).reshape(1, v)

    grid = (n_pad // tile,)
    cost = pl.CostEstimate(
        flops=8 * n_pad * v,
        transcendentals=n_pad * v + n_pad,
        bytes_accessed=4 * (n_pad * v + 2 * n_pad + v),
    )

    out = pl.pallas_call(
        _ce_kernel,
        out_shape=jax.ShapeDtypeStruct((n_pad, 1), jnp.float32),
        grid_spec=pltpu.PrefetchScalarGridSpec(
            num_scalar_prefetch=0,
            grid=grid,
            in_specs=[
                pl.BlockSpec((tile, v), lambda i: (i, 0)),   # logits tile
                pl.BlockSpec((tile, 1), lambda i: (i, 0)),   # targets tile
                pl.BlockSpec((1, v), lambda i: (0, 0)),      # class weights (resident)
            ],
            out_specs=pl.BlockSpec((tile, 1), lambda i: (i, 0)),
        ),
        compiler_params=pltpu.CompilerParams(
            dimension_semantics=("parallel",),
            vmem_limit_bytes=32 * 1024 * 1024,
        ),
        cost_estimate=cost,
    )(logits_p, target_p, cw)

    return out[:n, 0]


def cross_entropy_loss_ref(logits, target, class_weights):
    """Pure-JAX reference of the PyTorch forward (per-element weighted NLL)."""
    logp = jax.nn.log_softmax(logits.astype(jnp.float32), axis=-1)
    n = logits.shape[0]
    return -class_weights[target] * logp[jnp.arange(n), target]


if __name__ == "__main__":
    # Small shapes: 256 tokens, 128 classes.
    N, V = 256, 128
    key = jax.random.PRNGKey(0)
    k_logits, k_tgt, k_cw = jax.random.split(key, 3)
    logits = jax.random.normal(k_logits, (N, V), dtype=jnp.float32)
    target = jax.random.randint(k_tgt, (N,), 0, V, dtype=jnp.int32)
    class_weights = jax.random.uniform(k_cw, (V,), jnp.float32, 0.5, 1.5)

    # tile_n=64 -> grid of 4 token tiles, exercising the pipelined path.
    result = cross_entropy_loss(logits, target, class_weights, tile_n=64)
    jax.block_until_ready(result)

    expected = cross_entropy_loss_ref(logits, target, class_weights)
    assert result.shape == (N,)
    assert jnp.allclose(result, expected, rtol=1e-5, atol=1e-5), (result, expected)

    print("KERNEL_OK")
</pallas_src>

<mosaic_0001>
module attributes {stable_mosaic.version = 11 : i64} {
  func.func @_ce_kernel(%arg0: i32, %arg1: memref<64x128xf32, #tpu.memory_space<vmem>>, %arg2: memref<64x1xi32, #tpu.memory_space<vmem>>, %arg3: memref<1x128xf32, #tpu.memory_space<vmem>>, %arg4: memref<64x1xf32, #tpu.memory_space<vmem>>) attributes {dimension_semantics = [#tpu.dimension_semantics<parallel>], iteration_bounds = array<i64: 4>, scalar_prefetch = 0 : i64, scratch_operands = 0 : i64, tpu.core_type = #tpu.core_type<tc>, window_params = [{transform_indices = @transform_0, window_bounds = array<i64: 64, 128>}, {transform_indices = @transform_1, window_bounds = array<i64: 64, 1>}, {pipeline_mode = #tpu.pipeline_mode<synchronous>, transform_indices = @transform_2, window_bounds = array<i64: 1, 128>}, {transform_indices = @transform_3, window_bounds = array<i64: 64, 1>}]} {
    %c0 = arith.constant 0 : index
    %c0_0 = arith.constant 0 : index
    %0 = vector.load %arg1[%c0, %c0_0] : memref<64x128xf32, #tpu.memory_space<vmem>>, vector<64x128xf32>
    %cst = arith.constant dense<0xFF800000> : vector<64xf32>
    %1 = vector.multi_reduction <maximumf>, %0, %cst [1] : vector<64x128xf32> to vector<64xf32>
    %2 = vector.shape_cast %1 : vector<64xf32> to vector<64x1xf32>
    %3 = vector.broadcast %2 : vector<64x1xf32> to vector<64x128xf32>
    %4 = arith.subf %0, %3 : vector<64x128xf32>
    %5 = math.exp %4 : vector<64x128xf32>
    %cst_1 = arith.constant dense<0.000000e+00> : vector<64xf32>
    %6 = vector.multi_reduction <add>, %5, %cst_1 [1] : vector<64x128xf32> to vector<64xf32>
    %7 = vector.shape_cast %6 : vector<64xf32> to vector<64x1xf32>
    %8 = math.log %7 : vector<64x1xf32>
    %9 = tpu.iota {dimensions = array<i32: 1>} : vector<64x128xi32>
    %c0_2 = arith.constant 0 : index
    %c0_3 = arith.constant 0 : index
    %10 = vector.load %arg2[%c0_2, %c0_3] : memref<64x1xi32, #tpu.memory_space<vmem>>, vector<64x1xi32>
    %11 = vector.broadcast %10 : vector<64x1xi32> to vector<64x128xi32>
    %12 = arith.cmpi eq, %9, %11 : vector<64x128xi32>
    %13 = arith.extui %12 : vector<64x128xi1> to vector<64x128xi32>
    %14 = arith.sitofp %13 : vector<64x128xi32> to vector<64x128xf32>
    %15 = arith.mulf %4, %14 : vector<64x128xf32>
    %cst_4 = arith.constant dense<0.000000e+00> : vector<64xf32>
    %16 = vector.multi_reduction <add>, %15, %cst_4 [1] : vector<64x128xf32> to vector<64xf32>
    %17 = vector.shape_cast %16 : vector<64xf32> to vector<64x1xf32>
    %c0_5 = arith.constant 0 : index
    %c0_6 = arith.constant 0 : index
    %18 = vector.load %arg3[%c0_5, %c0_6] : memref<1x128xf32, #tpu.memory_space<vmem>>, vector<1x128xf32>
    %19 = vector.broadcast %18 : vector<1x128xf32> to vector<64x128xf32>
    %20 = arith.mulf %19, %14 : vector<64x128xf32>
    %cst_7 = arith.constant dense<0.000000e+00> : vector<64xf32>
    %21 = vector.multi_reduction <add>, %20, %cst_7 [1] : vector<64x128xf32> to vector<64xf32>
    %22 = vector.shape_cast %21 : vector<64xf32> to vector<64x1xf32>
    %23 = arith.subf %8, %17 : vector<64x1xf32>
    %24 = arith.mulf %22, %23 : vector<64x1xf32>
    %c0_8 = arith.constant 0 : index
    %c0_9 = arith.constant 0 : index
    %25 = vector.load %arg4[%c0_8, %c0_9] : memref<64x1xf32, #tpu.memory_space<vmem>>, vector<64x1xf32>
    tpu.vector_store %arg4[%c0_8, %c0_9], %24 {strides = array<i32>} : memref<64x1xf32, #tpu.memory_space<vmem>>, vector<64x1xf32>,
    return
  }
  func.func @transform_0(%arg0: i32) -> (i32, i32) {
    %c0_i32 = arith.constant 0 : i32
    %c0_i32_0 = arith.constant 0 : i32
    return %arg0, %c0_i32 : i32, i32
  }
  func.func @transform_1(%arg0: i32) -> (i32, i32) {
    %c0_i32 = arith.constant 0 : i32
    %c0_i32_0 = arith.constant 0 : i32
    return %arg0, %c0_i32 : i32, i32
  }
  func.func @transform_2(%arg0: i32) -> (i32, i32) {
    %c0_i32 = arith.constant 0 : i32
    %c0_i32_0 = arith.constant 0 : i32
    %c0_i32_1 = arith.constant 0 : i32
    return %c0_i32, %c0_i32_0 : i32, i32
  }
  func.func @transform_3(%arg0: i32) -> (i32, i32) {
    %c0_i32 = arith.constant 0 : i32
    %c0_i32_0 = arith.constant 0 : i32
    return %arg0, %c0_i32 : i32, i32
  }
}

</mosaic_0001>

<llo_original>
// kernel: tpu_custom_call.1
$region0: #{tpu_custom_call.1}
  #allocation0 [shape = 'u32[]', space=smem, size = 0x4, offset = 0x4, fixed_abs, tag = 'smem constant byte address 0x4 - core index']
  #allocation1 [shape = 'u32[144,128]{1,0:T(1,128)}', space=vmem, size = 0x12000, scoped, tag = 'internal scratch']
  %s0 = inlined_call_operand.vmem [shape: f32[256,128], index: 0, kind: input, shape index: {}]
  %s1 = inlined_call_operand.vmem [shape: s32[256,1], index: 1, kind: input, shape index: {}]
  %s2 = inlined_call_operand.vmem [shape: f32[1,128], index: 2, kind: input, shape index: {}]
  %s3 = inlined_call_operand.vmem [shape: f32[256,1], index: 3, kind: output, shape index: {}]
  %s4 = sld [smem:[#allocation0]]
  $region45: #{tpu_custom_call.1} parent=0
    _
  %s6 = ssub.s32 1, %s4
  %s7 = scalar_select 0, %s6, %s4
  loop: start=0, step=1, limit=6
  $region2: #{tpu_custom_call.1} parent=0 // loop_pre_header
    _
  $region3: #{tpu_custom_call.1} parent=0 // loop_header
    %s9 = sphi 0, %s13
    %p10 = scmp.ge.s32.totalorder %s9, 6
    %s19 = sphi 0, %s21
    %s22 = sphi 0, %s19
    %s23 = sphi 0, %s22
    %s39 = sphi 0, %s23
    %s45 = sphi 0, %s47
    %s48 = sphi 0, %s45
    %s49 = sphi 0, %s48
    %s65 = sphi 0, %s49
    %s69 = sphi 0, %s69
    %s71 = sphi 0, %s69
    %s72 = sphi 0, %s71
    %s86 = sphi 0, %s72
    %s92 = sphi 0, %s94
    %s95 = sphi 0, %s92
    %s96 = sphi 0, %s95
    %s112 = sphi 0, %s96
  $region4: #{tpu_custom_call.1} parent=0 // loop_header_branch
    %12 = sbr.rel (%p10) target = $region8
  $region5: #{tpu_custom_call.1} parent=0 // loop_body
    %s14 = ssub.s32 %s9, 1
    %s15 = ssub.s32 %s9, 2
    %s16 = sadd.s32 %s9, 1
    %s17 = ssub.s32 %s9, %s16
    %p18 = scmp.eq.s32.totalorder %s17, 0
    %s20 = sadd.s32 %s19, 1
    %s21 = scalar_select %p18, %s19, %s20
    %p24 = pneg %p18
    %p25 = scmp.eq.s32.totalorder %s9, 3
    %p26 = por %p24, %p25
    %p27 = scmp.ne.s32.totalorder %s19, %s22
    %p28 = scmp.eq.s32.totalorder %s9, 0
    %p29 = por %p27, %p28
    %p30 = scmp.ne.s32.totalorder %s19, %s22
    %p31 = scmp.eq.s32.totalorder %s14, 3
    %p32 = por %p30, %p31
    %p33 = scmp.ne.s32.totalorder %s22, %s23
    %p34 = scmp.eq.s32.totalorder %s14, 0
    %p35 = por %p33, %p34
    %p36 = scmp.ne.s32.totalorder %s22, %s23
    %p37 = scmp.eq.s32.totalorder %s15, 3
    %p38 = por %p36, %p37
    %p40 = scmp.ne.s32.totalorder %s23, %s39
    %p41 = scmp.eq.s32.totalorder %s15, 0
    %p42 = por %p40, %p41
    %s43 = ssub.s32 %s9, %s16
    %p44 = scmp.eq.s32.totalorder %s43, 0
    %s46 = sadd.s32 %s45, 1
    %s47 = scalar_select %p44, %s45, %s46
    %p50 = pneg %p44
    %p51 = scmp.eq.s32.totalorder %s9, 3
    %p52 = por %p50, %p51
    %p53 = scmp.ne.s32.totalorder %s45, %s48
    %p54 = scmp.eq.s32.totalorder %s9, 0
    %p55 = por %p53, %p54
    %p56 = scmp.ne.s32.totalorder %s45, %s48
    %p57 = scmp.eq.s32.totalorder %s14, 3
    %p58 = por %p56, %p57
    %p59 = scmp.ne.s32.totalorder %s48, %s49
    %p60 = scmp.eq.s32.totalorder %s14, 0
    %p61 = por %p59, %p60
    %p62 = scmp.ne.s32.totalorder %s48, %s49
    %p63 = scmp.eq.s32.totalorder %s15, 3
    %p64 = por %p62, %p63
    %p66 = scmp.ne.s32.totalorder %s49, %s65
    %p67 = scmp.eq.s32.totalorder %s15, 0
    %p68 = por %p66, %p67
    %s70 = sadd.s32 %s69, 1
    %p73 = scmp.eq.s32.totalorder %s9, 3
    %p74 = scmp.ne.s32.totalorder %s69, %s71
    %p75 = scmp.eq.s32.totalorder %s9, 0
    %p76 = por %p74, %p75
    %p77 = scmp.ne.s32.totalorder %s69, %s71
    %p78 = scmp.eq.s32.totalorder %s14, 3
    %p79 = por %p77, %p78
    %p80 = scmp.ne.s32.totalorder %s71, %s72
    %p81 = scmp.eq.s32.totalorder %s14, 0
    %p82 = por %p80, %p81
    %p83 = scmp.ne.s32.totalorder %s71, %s72
    %p84 = scmp.eq.s32.totalorder %s15, 3
    %p85 = por %p83, %p84
    %p87 = scmp.ne.s32.totalorder %s72, %s86
    %p88 = scmp.eq.s32.totalorder %s15, 0
    %p89 = por %p87, %p88
    %s90 = ssub.s32 %s9, %s16
    %p91 = scmp.eq.s32.totalorder %s90, 0
    %s93 = sadd.s32 %s92, 1
    %s94 = scalar_select %p91, %s92, %s93
    %p97 = pneg %p91
    %p98 = scmp.eq.s32.totalorder %s9, 3
    %p99 = por %p97, %p98
    %p100 = scmp.ne.s32.totalorder %s92, %s95
    %p101 = scmp.eq.s32.totalorder %s9, 0
    %p102 = por %p100, %p101
    %p103 = scmp.ne.s32.totalorder %s92, %s95
    %p104 = scmp.eq.s32.totalorder %s14, 3
    %p105 = por %p103, %p104
    %p106 = scmp.ne.s32.totalorder %s95, %s96
    %p107 = scmp.eq.s32.totalorder %s14, 0
    %p108 = por %p106, %p107
    %p109 = scmp.ne.s32.totalorder %s95, %s96
    %p110 = scmp.eq.s32.totalorder %s15, 3
    %p111 = por %p109, %p110
    %p113 = scmp.ne.s32.totalorder %s96, %s112
    %p114 = scmp.eq.s32.totalorder %s15, 0
    %p115 = por %p113, %p114
    %p116 = scmp.le.s32.totalorder 1, %s9
    %p117 = scmp.lt.s32.totalorder %s9, 5
    %p118 = pnand %p116, %p117
    %p119 = pneg %p118
    // Predicated region
    $region9: #{tpu_custom_call.1} parent=5 // pred_check
      _
    $region10: #{tpu_custom_call.1} parent=5 // pred_check_branch
      %121 = sbr.rel (%p118) target = $region12
    $region11: #{tpu_custom_call.1} parent=5 // pred_region
      %s122 = ssub.s32 %s9, 1
      // Predicated region
      $region13: #{tpu_custom_call.1} parent=11 // pred_check
        %p123 = pneg %p82
      $region14: #{tpu_custom_call.1} parent=11 // pred_check_branch
        %125 = sbr.rel (%p123) target = $region16
      $region15: #{tpu_custom_call.1} parent=11 // pred_region
        _
      $region16: #{tpu_custom_call.1} parent=11 // pred_fallthru
        _
    $region12: #{tpu_custom_call.1} parent=5 // pred_fallthru
      _
    %p126 = scmp.lt.s32.totalorder %s9, 4
    // Predicated region
    $region17: #{tpu_custom_call.1} parent=5 // pred_check
      %p127 = pneg %p126
    $region18: #{tpu_custom_call.1} parent=5 // pred_check_branch
      %129 = sbr.rel (%p127) target = $region20
    $region19: #{tpu_custom_call.1} parent=5 // pred_region
      // Predicated region
      $region21: #{tpu_custom_call.1} parent=19 // pred_check
        %p130 = pneg %p29
      $region22: #{tpu_custom_call.1} parent=19 // pred_check_branch
        %132 = sbr.rel (%p130) target = $region24
      $region23: #{tpu_custom_call.1} parent=19 // pred_region
        %s133 = smul.u32 8, %s9
        %p134 = scmp.lt.s32.totalorder %s133, 31
        %s135 = scalar_select %p134, %s133, 31
        %s136 = smul.addr %s135, 8
        %s137 = scalar_lea.vmem %s0, %s136
        %s138 = smul.u32 8, %s9
      $region24: #{tpu_custom_call.1} parent=19 // pred_fallthru
        _
      // Predicated region
      $region25: #{tpu_custom_call.1} parent=19 // pred_check
        %p139 = pneg %p55
      $region26: #{tpu_custom_call.1} parent=19 // pred_check_branch
        %141 = sbr.rel (%p139) target = $region28
      $region27: #{tpu_custom_call.1} parent=19 // pred_region
        %s142 = smul.u32 8, %s9
        %p143 = scmp.lt.s32.totalorder %s142, 31
        %s144 = scalar_select %p143, %s142, 31
        %s145 = smul.addr %s144, 8
        %s146 = scalar_lea.vmem %s1, %s145
        %s147 = smul.u32 8, %s9
      $region28: #{tpu_custom_call.1} parent=19 // pred_fallthru
        _
    $region20: #{tpu_custom_call.1} parent=5 // pred_fallthru
      _
    %p148 = scmp.le.s32.totalorder 1, %s9
    %p149 = scmp.lt.s32.totalorder %s9, 5
    %p150 = pnand %p148, %p149
    %p151 = pneg %p150
    // Predicated region
    $region29: #{tpu_custom_call.1} parent=5 // pred_check
      _
    $region30: #{tpu_custom_call.1} parent=5 // pred_check_branch
      %153 = sbr.rel (%p150) target = $region32
    $region31: #{tpu_custom_call.1} parent=5 // pred_region
      %s154 = ssub.s32 %s9, 1
      %s155 = smul.u32 8, %s14
      %p156 = scmp.lt.s32.totalorder %s155, 31
      %s157 = scalar_select %p156, %s155, 31
      %s158 = smul.addr %s157, 8
      %s159 = scalar_lea.vmem %s0, %s158
      %p160 = pneg %p35
      %p161 = pneg %p32
      %s162 = smul.u32 8, %s14
      %p163 = scmp.lt.s32.totalorder %s162, 31
      %s164 = scalar_select %p163, %s162, 31
      %s165 = smul.addr %s164, 8
      %s166 = scalar_lea.vmem %s1, %s165
      %p167 = pneg %p61
      %p168 = pneg %p58
      %p169 = pneg %p82
      %p170 = pneg %p79
      %p171 = pneg %p108
      %p172 = pneg %p105
      %s173 = smul.u32 8, %s14
      %p174 = scmp.lt.s32.totalorder %s173, 31
      %s175 = scalar_select %p174, %s173, 31
      %s176 = smul.addr %s175, 8
      %s177 = scalar_lea.vmem %s3, %s176
      %s178 = smul.u32 8, %s14
      %p179 = scmp.lt.s32.totalorder %s178, 31
      %s180 = scalar_select %p179, %s178, 31
      %s181 = smul.addr %s180, 8
      %s182 = scalar_lea.vmem %s0, %s181
      %s183 = smul.u32 8, %s14
      %s184 = smul.u32 8, %s14
      %p185 = scmp.lt.s32.totalorder %s184, 31
      %s186 = scalar_select %p185, %s184, 31
      %s187 = smul.addr %s186, 8
      %s188 = scalar_lea.vmem %s1, %s187
      %s189 = smul.u32 8, %s14
      %s190 = smul.u32 8, %s14
      %p191 = scmp.lt.s32.totalorder %s190, 31
      %s192 = scalar_select %p191, %s190, 31
      %s193 = smul.addr %s192, 8
      %s194 = scalar_lea.vmem %s3, %s193
      %s195 = smul.u32 8, %s14
      %v196 = vld [vmem:[%s182] sm:$0xff]
      %v197 = vld [vmem:[%s182 + $0x8] sm:$0xff]
      %v198 = vld [vmem:[%s182 + $0x10] sm:$0xff]
      %v199 = vld [vmem:[%s182 + $0x18] sm:$0xff]
      %v200 = vld [vmem:[%s182 + $0x20] sm:$0xff]
      %v201 = vld [vmem:[%s182 + $0x28] sm:$0xff]
      %v202 = vld [vmem:[%s182 + $0x30] sm:$0xff]
      %v203 = vld [vmem:[%s182 + $0x38] sm:$0xff]
      %204 = vmax.xlane.f32.xlu0 %v196
      %v205 = vpop.xlane.xlu0 %204
      %206 = vmax.xlane.f32.xlu0 %v197
      %v207 = vpop.xlane.xlu0 %206
      %208 = vmax.xlane.f32.xlu0 %v198
      %v209 = vpop.xlane.xlu0 %208
      %210 = vmax.xlane.f32.xlu0 %v199
      %v211 = vpop.xlane.xlu0 %210
      %212 = vmax.xlane.f32.xlu0 %v200
      %v213 = vpop.xlane.xlu0 %212
      %214 = vmax.xlane.f32.xlu0 %v201
      %v215 = vpop.xlane.xlu0 %214
      %216 = vmax.xlane.f32.xlu0 %v202
      %v217 = vpop.xlane.xlu0 %216
      %218 = vmax.xlane.f32.xlu0 %v203
      %v219 = vpop.xlane.xlu0 %218
      %v220 = vsub.f32 %v196, %v205
      %v221 = vsub.f32 %v197, %v207
      %v222 = vsub.f32 %v198, %v209
      %v223 = vsub.f32 %v199, %v211
      %v224 = vsub.f32 %v200, %v213
      %v225 = vsub.f32 %v201, %v215
      %v226 = vsub.f32 %v202, %v217
      %v227 = vsub.f32 %v203, %v219
      %v228 = vmul.f32 %v220, 1.442695
      %v229 = vpow.pop %v228
      %v230 = vmul.f32 %v221, 1.442695
      %v231 = vpow.pop %v230
      %v232 = vmul.f32 %v222, 1.442695
      %v233 = vpow.pop %v232
      %v234 = vmul.f32 %v223, 1.442695
      %v235 = vpow.pop %v234
      %v236 = vmul.f32 %v224, 1.442695
      %v237 = vpow.pop %v236
      %v238 = vmul.f32 %v225, 1.442695
      %v239 = vpow.pop %v238
      %v240 = vmul.f32 %v226, 1.442695
      %v241 = vpow.pop %v240
      %v242 = vmul.f32 %v227, 1.442695
      %v243 = vpow.pop %v242
      %244 = vadd.xlane.f32.xlu0 %v229
      %v245 = vpop.xlane.xlu0 %244
      %246 = vadd.xlane.f32.xlu0 %v231
      %v247 = vpop.xlane.xlu0 %246
      %248 = vadd.xlane.f32.xlu0 %v233
      %v249 = vpop.xlane.xlu0 %248
      %250 = vadd.xlane.f32.xlu0 %v235
      %v251 = vpop.xlane.xlu0 %250
      %252 = vadd.xlane.f32.xlu0 %v237
      %v253 = vpop.xlane.xlu0 %252
      %254 = vadd.xlane.f32.xlu0 %v239
      %v255 = vpop.xlane.xlu0 %254
      %256 = vadd.xlane.f32.xlu0 %v241
      %v257 = vpop.xlane.xlu0 %256
      %258 = vadd.xlane.f32.xlu0 %v243
      %v259 = vpop.xlane.xlu0 %258
      %v260 = vlog2.pop %v245
      %v261 = vmul.f32 %v260, 0.6931472
      %v262 = vlog2.pop %v247
      %v263 = vmul.f32 %v262, 0.6931472
      %v264 = vlog2.pop %v249
      %v265 = vmul.f32 %v264, 0.6931472
      %v266 = vlog2.pop %v251
      %v267 = vmul.f32 %v266, 0.6931472
      %v268 = vlog2.pop %v253
      %v269 = vmul.f32 %v268, 0.6931472
      %v270 = vlog2.pop %v255
      %v271 = vmul.f32 %v270, 0.6931472
      %v272 = vlog2.pop %v257
      %v273 = vmul.f32 %v272, 0.6931472
      %v274 = vlog2.pop %v259
      %v275 = vmul.f32 %v274, 0.6931472
      %v276 = vlaneseq
      %v277 = vand.u32 %v276, 127
      %v278 = vld [vmem:[%s188] sm:$0xff]
      %v279 = vld [vmem:[%s188 + $0x8] sm:$0xff]
      %v280 = vld [vmem:[%s188 + $0x10] sm:$0xff]
      %v281 = vld [vmem:[%s188 + $0x18] sm:$0xff]
      %v282 = vld [vmem:[%s188 + $0x20] sm:$0xff]
      %v283 = vld [vmem:[%s188 + $0x28] sm:$0xff]
      %v284 = vld [vmem:[%s188 + $0x30] sm:$0xff]
      %v285 = vld [vmem:[%s188 + $0x38] sm:$0xff]
      %286 = vset.pattern.permute.xlu0 0
      %287 = vperm.xlu0 %286, %v278
      %v288 = vpop.permute.xlu0 %287
      %289 = vset.pattern.permute.xlu0 0
      %290 = vperm.xlu0 %289, %v279
      %v291 = vpop.permute.xlu0 %290
      %292 = vset.pattern.permute.xlu0 0
      %293 = vperm.xlu0 %292, %v280
      %v294 = vpop.permute.xlu0 %293
      %295 = vset.pattern.permute.xlu0 0
      %296 = vperm.xlu0 %295, %v281
      %v297 = vpop.permute.xlu0 %296
      %298 = vset.pattern.permute.xlu0 0
      %299 = vperm.xlu0 %298, %v282
      %v300 = vpop.permute.xlu0 %299
      %301 = vset.pattern.permute.xlu0 0
      %302 = vperm.xlu0 %301, %v283
      %v303 = vpop.permute.xlu0 %302
      %304 = vset.pattern.permute.xlu0 0
      %305 = vperm.xlu0 %304, %v284
      %v306 = vpop.permute.xlu0 %305
      %307 = vset.pattern.permute.xlu0 0
      %308 = vperm.xlu0 %307, %v285
      %v309 = vpop.permute.xlu0 %308
      %vm310 = vcmp.eq.s32.totalorder %v277, %v288
      %vm311 = vcmp.eq.s32.totalorder %v277, %v291
      %vm312 = vcmp.eq.s32.totalorder %v277, %v294
      %vm313 = vcmp.eq.s32.totalorder %v277, %v297
      %vm314 = vcmp.eq.s32.totalorder %v277, %v300
      %vm315 = vcmp.eq.s32.totalorder %v277, %v303
      %vm316 = vcmp.eq.s32.totalorder %v277, %v306
      %vm317 = vcmp.eq.s32.totalorder %v277, %v309
      %v318 = vsel %vm310, 1, 0
      %v319 = vsel %vm311, 1, 0
      %v320 = vsel %vm312, 1, 0
      %v321 = vsel %vm313, 1, 0
      %v322 = vsel %vm314, 1, 0
      %v323 = vsel %vm315, 1, 0
      %v324 = vsel %vm316, 1, 0
      %v325 = vsel %vm317, 1, 0
      %v326 = vcvt.s32.f32 %v318
      %v327 = vcvt.s32.f32 %v319
      %v328 = vcvt.s32.f32 %v320
      %v329 = vcvt.s32.f32 %v321
      %v330 = vcvt.s32.f32 %v322
      %v331 = vcvt.s32.f32 %v323
      %v332 = vcvt.s32.f32 %v324
      %v333 = vcvt.s32.f32 %v325
      %v334 = vmul.f32 %v220, %v326
      %v335 = vmul.f32 %v221, %v327
      %v336 = vmul.f32 %v222, %v328
      %v337 = vmul.f32 %v223, %v329
      %v338 = vmul.f32 %v224, %v330
      %v339 = vmul.f32 %v225, %v331
      %v340 = vmul.f32 %v226, %v332
      %v341 = vmul.f32 %v227, %v333
      %342 = vadd.xlane.f32.xlu0 %v334
      %v343 = vpop.xlane.xlu0 %342
      %344 = vadd.xlane.f32.xlu0 %v335
      %v345 = vpop.xlane.xlu0 %344
      %346 = vadd.xlane.f32.xlu0 %v336
      %v347 = vpop.xlane.xlu0 %346
      %348 = vadd.xlane.f32.xlu0 %v337
      %v349 = vpop.xlane.xlu0 %348
      %350 = vadd.xlane.f32.xlu0 %v338
      %v351 = vpop.xlane.xlu0 %350
      %352 = vadd.xlane.f32.xlu0 %v339
      %v353 = vpop.xlane.xlu0 %352
      %354 = vadd.xlane.f32.xlu0 %v340
      %v355 = vpop.xlane.xlu0 %354
      %356 = vadd.xlane.f32.xlu0 %v341
      %v357 = vpop.xlane.xlu0 %356
      %v358 = vld [vmem:[%s2] sm:$0x1]
      %v360 = vlaneseq
      %v361 = vshrl.u32 %v360, 7
      %v362 = vsub.s32 0, %v361
      %v363 = vrot.slane %v358, %v362
      %v365 = vmul.f32 %v363, %v326
      %v366 = vmul.f32 %v363, %v327
      %v367 = vmul.f32 %v363, %v328
      %v368 = vmul.f32 %v363, %v329
      %v369 = vmul.f32 %v363, %v330
      %v370 = vmul.f32 %v363, %v331
      %v371 = vmul.f32 %v363, %v332
      %v372 = vmul.f32 %v363, %v333
      %373 = vadd.xlane.f32.xlu0 %v365
      %v374 = vpop.xlane.xlu0 %373
      %375 = vadd.xlane.f32.xlu0 %v366
      %v376 = vpop.xlane.xlu0 %375
      %377 = vadd.xlane.f32.xlu0 %v367
      %v378 = vpop.xlane.xlu0 %377
      %379 = vadd.xlane.f32.xlu0 %v368
      %v380 = vpop.xlane.xlu0 %379
      %381 = vadd.xlane.f32.xlu0 %v369
      %v382 = vpop.xlane.xlu0 %381
      %383 = vadd.xlane.f32.xlu0 %v370
      %v384 = vpop.xlane.xlu0 %383
      %385 = vadd.xlane.f32.xlu0 %v371
      %v386 = vpop.xlane.xlu0 %385
      %387 = vadd.xlane.f32.xlu0 %v372
      %v388 = vpop.xlane.xlu0 %387
      %v389 = vsub.f32 %v261, %v343
      %v390 = vsub.f32 %v263, %v345
      %v391 = vsub.f32 %v265, %v347
      %v392 = vsub.f32 %v267, %v349
      %v393 = vsub.f32 %v269, %v351
      %v394 = vsub.f32 %v271, %v353
      %v395 = vsub.f32 %v273, %v355
      %v396 = vsub.f32 %v275, %v357
      %v397 = vmul.f32 %v374, %v389
      %v398 = vmul.f32 %v376, %v390
      %v399 = vmul.f32 %v378, %v391
      %v400 = vmul.f32 %v380, %v392
      %v401 = vmul.f32 %v382, %v393
      %v402 = vmul.f32 %v384, %v394
      %v403 = vmul.f32 %v386, %v395
      %v404 = vmul.f32 %v388, %v396
      %vm405 = vcmask 7168
      %406 = vst.msk [vmem:[%s194] sm:$0xff] %vm405, %v397
      %407 = vst.msk [vmem:[%s194 + $0x8] sm:$0xff] %vm405, %v398
      %408 = vst.msk [vmem:[%s194 + $0x10] sm:$0xff] %vm405, %v399
      %409 = vst.msk [vmem:[%s194 + $0x18] sm:$0xff] %vm405, %v400
      %410 = vst.msk [vmem:[%s194 + $0x20] sm:$0xff] %vm405, %v401
      %411 = vst.msk [vmem:[%s194 + $0x28] sm:$0xff] %vm405, %v402
      %412 = vst.msk [vmem:[%s194 + $0x30] sm:$0xff] %vm405, %v403
      %413 = vst.msk [vmem:[%s194 + $0x38] sm:$0xff] %vm405, %v404
      %s414 = smul.u32 8, %s14
      %p415 = scmp.lt.s32.totalorder %s414, 31
      %s416 = scalar_select %p415, %s414, 31
      %s417 = smul.addr %s416, 8
      %s418 = scalar_lea.vmem %s3, %s417
      // Predicated region
      $region33: #{tpu_custom_call.1} parent=31 // pred_check
        %p419 = pneg %p105
      $region34: #{tpu_custom_call.1} parent=31 // pred_check_branch
        %421 = sbr.rel (%p419) target = $region36
      $region35: #{tpu_custom_call.1} parent=31 // pred_region
        %s422 = smul.u32 8, %s14
      $region36: #{tpu_custom_call.1} parent=31 // pred_fallthru
        _
    $region32: #{tpu_custom_call.1} parent=5 // pred_fallthru
      _
    %p423 = scmp.le.s32.totalorder 2, %s9
    // Predicated region
    $region37: #{tpu_custom_call.1} parent=5 // pred_check
      %p424 = pneg %p423
    $region38: #{tpu_custom_call.1} parent=5 // pred_check_branch
      %426 = sbr.rel (%p424) target = $region40
    $region39: #{tpu_custom_call.1} parent=5 // pred_region
      %s427 = ssub.s32 %s9, 2
      // Predicated region
      $region41: #{tpu_custom_call.1} parent=39 // pred_check
        %p428 = pneg %p111
      $region42: #{tpu_custom_call.1} parent=39 // pred_check_branch
        %430 = sbr.rel (%p428) target = $region44
      $region43: #{tpu_custom_call.1} parent=39 // pred_region
        %s431 = smul.u32 8, %s15
        %p432 = scmp.lt.s32.totalorder %s431, 31
        %s433 = scalar_select %p432, %s431, 31
        %s434 = smul.addr %s433, 8
        %s435 = scalar_lea.vmem %s3, %s434
      $region44: #{tpu_custom_call.1} parent=39 // pred_fallthru
        _
    $region40: #{tpu_custom_call.1} parent=5 // pred_fallthru
      _
  $region6: #{tpu_custom_call.1} parent=0 // loop_footer
    %s13 = sadd.s32 1, %s9
  $region7: #{tpu_custom_call.1} parent=0 // loop_footer_branch
    %8 = sbr.rel target = $region3
  $region8: #{tpu_custom_call.1} parent=0 // loop_exit
    _

</llo_original>
